<compile_context>
chip_gen: v5e
topology: v5e:2x2
jax: 0.10.0
libtpu: 0.0.40
codegen_flags: <defaults>
</compile_context>

<pallas_src>
import jax
import jax.numpy as jnp
from jax.experimental import pallas as pl
from jax.experimental.pallas import tpu as pltpu


def _pool_heads_kernel(mask_ref, x_ref, w_ref, b_ref, logits_ref,
                       se_acc, den_acc):
    """Masked mean-pool over S (tiled, f32 accumulation) + fused head matmul."""
    s = pl.program_id(1)

    @pl.when(s == 0)
    def _():
        se_acc[...] = jnp.zeros_like(se_acc)
        den_acc[...] = jnp.zeros_like(den_acc)

    # bf16 in HBM/VMEM; upcast in-vreg before the mask multiply-add.
    x = x_ref[...].astype(jnp.float32)                      # (TB, TS, H)
    m = mask_ref[...]                                       # (TB, TS) f32
    se_acc[...] += jnp.sum(x * m[:, :, None], axis=1)       # (TB, H)
    den_acc[...] += jnp.sum(m, axis=1, keepdims=True)       # (TB, 1)

    @pl.when(s == pl.num_programs(1) - 1)
    def _():
        # Precondition (as with real BERT inputs): every attention_mask row has
        # at least one valid token, so den > 0.
        se = se_acc[...] * pl.reciprocal(den_acc[...], approx=False)
        # One lane-dense MXU matmul for both heads (weights fused + padded to a
        # multiple of 128 on the N dim by the wrapper).
        logits_ref[...] = (jnp.dot(se, w_ref[...],
                                   preferred_element_type=jnp.float32)
                           + b_ref[...])


def _multi_margin_loss(logits, labels):
    """nn.MultiMarginLoss (p=1, margin=1, reduction='mean')."""
    b, c = logits.shape
    x_y = jnp.take_along_axis(logits, labels[:, None], axis=1)       # (B, 1)
    margins = jnp.maximum(0.0, 1.0 - x_y + logits)
    is_tgt = jax.lax.broadcasted_iota(jnp.int32, (b, c), 1) == labels[:, None]
    margins = jnp.where(is_tgt, 0.0, margins)                        # skip i == y
    return jnp.mean(jnp.sum(margins, axis=1) / jnp.float32(c))


def bert_linear_forward(x, attention_mask, labels_cat, labels_pol,
                        w_cat, b_cat, w_pol, b_pol):
    """x: (B, S, 768) layer-11 hidden states. Returns (loss, logits_cat, logits_pol)."""
    B, S, H = x.shape
    num_cat = w_cat.shape[0]
    num_pol = w_pol.shape[0]
    C = num_cat + num_pol
    c_pad = max(128, ((C + 127) // 128) * 128)

    # Fused, lane-dense head weights / bias (zero padding in unused columns).
    w_all = jnp.zeros((H, c_pad), jnp.float32)
    w_all = w_all.at[:, :num_cat].set(w_cat.T.astype(jnp.float32))
    w_all = w_all.at[:, num_cat:C].set(w_pol.T.astype(jnp.float32))
    b_all = jnp.zeros((1, c_pad), jnp.float32)
    b_all = b_all.at[0, :num_cat].set(b_cat.astype(jnp.float32))
    b_all = b_all.at[0, num_cat:C].set(b_pol.astype(jnp.float32))

    x_bf16 = x.astype(jnp.bfloat16)              # halve the dominant HBM stream
    mask = attention_mask.astype(jnp.float32)

    # Batch tile: multiple of 8 when possible (sublane alignment for the mask).
    tb = 8 if (B % 8 == 0) else B
    # Sequence tile: multiple of 128 when possible (lane alignment for the
    # mask); sized so two x buffers stay a few MiB -> fits the default scoped
    # VMEM on v5e (16 MiB) and is far below v7x's 64 MiB physical VMEM.
    if S % 256 == 0:
        ts = 256
    elif S % 128 == 0:
        ts = 128
    else:
        ts = S
    nb, ns = B // tb, S // ts

    x_tile_bytes = tb * ts * H * 2
    vmem_need = (2 * (x_tile_bytes + tb * ts * 4 + H * c_pad * 4
                      + c_pad * 4 + tb * c_pad * 4)
                 + tb * H * 4 + tb * 4)
    vmem_limit = int(min(48 * 1024 * 1024,
                         max(2 * vmem_need, 16 * 1024 * 1024)))

    logits_all = pl.pallas_call(
        _pool_heads_kernel,
        out_shape=jax.ShapeDtypeStruct((B, c_pad), jnp.float32),
        grid_spec=pltpu.PrefetchScalarGridSpec(
            num_scalar_prefetch=0,
            grid=(nb, ns),
            in_specs=[
                pl.BlockSpec((tb, ts), lambda i, s: (i, s)),         # mask
                pl.BlockSpec((tb, ts, H), lambda i, s: (i, s, 0)),   # x (bf16)
                pl.BlockSpec((H, c_pad), lambda i, s: (0, 0)),       # fused W
                pl.BlockSpec((1, c_pad), lambda i, s: (0, 0)),       # fused b
            ],
            out_specs=pl.BlockSpec((tb, c_pad), lambda i, s: (i, 0)),
            scratch_shapes=[pltpu.VMEM((tb, H), jnp.float32),        # se accum
                            pltpu.VMEM((tb, 1), jnp.float32)],       # den accum
        ),
        compiler_params=pltpu.CompilerParams(
            dimension_semantics=("parallel", "arbitrary"),
            vmem_limit_bytes=vmem_limit),
        cost_estimate=pl.CostEstimate(
            flops=2 * B * S * H + 2 * B * H * c_pad,
            transcendentals=B,
            bytes_accessed=B * S * H * 2 + B * S * 4
                           + H * c_pad * 4 + B * c_pad * 4),
    )(mask, x_bf16, w_all, b_all)

    logits_cat = logits_all[:, :num_cat]
    logits_pol = logits_all[:, num_cat:C]

    loss = (_multi_margin_loss(logits_cat, labels_cat.astype(jnp.int32)) +
            _multi_margin_loss(logits_pol, labels_pol.astype(jnp.int32)))
    return loss, logits_cat, logits_pol


def reference_forward(x, attention_mask, labels_cat, labels_pol,
                      w_cat, b_cat, w_pol, b_pol):
    xf = x.astype(jnp.float32)
    mask = attention_mask.astype(jnp.float32)
    se = (jnp.sum(xf * mask[:, :, None], axis=1)
          / jnp.sum(mask, axis=1, keepdims=True))
    logits_cat = se @ w_cat.T + b_cat
    logits_pol = se @ w_pol.T + b_pol
    loss = (_multi_margin_loss(logits_cat, labels_cat) +
            _multi_margin_loss(logits_pol, labels_pol))
    return loss, logits_cat, logits_pol


if __name__ == "__main__":
    B, S, H = 2, 8, 768            # hidden size fixed at 768 by the module
    num_cat, num_pol = 12, 3

    key = jax.random.PRNGKey(0)
    kx, kw1, kb1, kw2, kb2, klc, klp = jax.random.split(key, 7)

    # layer-11 hidden states, supplied in bf16 (the kernel's preferred dtype)
    x = jax.random.normal(kx, (B, S, H), dtype=jnp.float32).astype(jnp.bfloat16)
    # attention_mask: leading tokens valid, rest padding (never all-zero per row)
    attention_mask = jnp.array(
        [[1] * 6 + [0] * (S - 6),
         [1] * 4 + [0] * (S - 4)], dtype=jnp.int32)
    labels_cat = jax.random.randint(klc, (B,), 0, num_cat, dtype=jnp.int32)
    labels_pol = jax.random.randint(klp, (B,), 0, num_pol, dtype=jnp.int32)

    # Deterministic parameter init (synthetic; not a checkpoint load)
    w_cat = jax.random.normal(kw1, (num_cat, H), dtype=jnp.float32) * 0.02
    b_cat = jax.random.normal(kb1, (num_cat,), dtype=jnp.float32) * 0.02
    w_pol = jax.random.normal(kw2, (num_pol, H), dtype=jnp.float32) * 0.02
    b_pol = jax.random.normal(kb2, (num_pol,), dtype=jnp.float32) * 0.02

    loss, logits_cat, logits_pol = bert_linear_forward(
        x, attention_mask, labels_cat, labels_pol, w_cat, b_cat, w_pol, b_pol)
    jax.block_until_ready((loss, logits_cat, logits_pol))

    # correctness check vs pure-JAX reference (same bf16 x, f32 compute)
    loss_r, lc_r, lp_r = reference_forward(
        x, attention_mask, labels_cat, labels_pol, w_cat, b_cat, w_pol, b_pol)
    assert jnp.allclose(loss, loss_r, atol=1e-4, rtol=1e-4)
    assert jnp.allclose(logits_cat, lc_r, atol=1e-4, rtol=1e-4)
    assert jnp.allclose(logits_pol, lp_r, atol=1e-4, rtol=1e-4)

    print("KERNEL_OK")
</pallas_src>

<mosaic_0001>
module attributes {stable_mosaic.version = 11 : i64} {
  func.func @_pool_heads_kernel(%arg0: i32, %arg1: i32, %arg2: memref<2x8xf32, #tpu.memory_space<vmem>>, %arg3: memref<2x8x768xbf16, #tpu.memory_space<vmem>>, %arg4: memref<768x128xf32, #tpu.memory_space<vmem>>, %arg5: memref<1x128xf32, #tpu.memory_space<vmem>>, %arg6: memref<2x128xf32, #tpu.memory_space<vmem>>, %arg7: memref<2x768xf32, #tpu.memory_space<vmem>>, %arg8: memref<2x1xf32, #tpu.memory_space<vmem>>) attributes {dimension_semantics = [#tpu.dimension_semantics<parallel>, #tpu.dimension_semantics<arbitrary>], iteration_bounds = array<i64: 1, 1>, scalar_prefetch = 0 : i64, scratch_operands = 2 : i64, tpu.core_type = #tpu.core_type<tc>, window_params = [{transform_indices = @transform_0, window_bounds = array<i64: 2, 8>}, {transform_indices = @transform_1, window_bounds = array<i64: 2, 8, 768>}, {pipeline_mode = #tpu.pipeline_mode<synchronous>, transform_indices = @transform_2, window_bounds = array<i64: 768, 128>}, {pipeline_mode = #tpu.pipeline_mode<synchronous>, transform_indices = @transform_3, window_bounds = array<i64: 1, 128>}, {transform_indices = @transform_4, window_bounds = array<i64: 2, 128>}]} {
    %c0_i32 = arith.constant 0 : i32
    %0 = arith.cmpi eq, %arg1, %c0_i32 : i32
    %1 = arith.extui %0 : i1 to i32
    %c0_i32_0 = arith.constant 0 : i32
    %2 = arith.cmpi ne, %1, %c0_i32_0 : i32
    scf.if %2 {
      %cst_16 = arith.constant 0.000000e+00 : f32
      %21 = vector.broadcast %cst_16 : f32 to vector<2x768xf32>
      %c0_17 = arith.constant 0 : index
      %c0_18 = arith.constant 0 : index
      %22 = vector.load %arg7[%c0_17, %c0_18] : memref<2x768xf32, #tpu.memory_space<vmem>>, vector<2x768xf32>
      tpu.vector_store %arg7[%c0_17, %c0_18], %21 {strides = array<i32>} : memref<2x768xf32, #tpu.memory_space<vmem>>, vector<2x768xf32>,
      %cst_19 = arith.constant 0.000000e+00 : f32
      %23 = vector.broadcast %cst_19 : f32 to vector<2x1xf32>
      %c0_20 = arith.constant 0 : index
      %c0_21 = arith.constant 0 : index
      %24 = vector.load %arg8[%c0_20, %c0_21] : memref<2x1xf32, #tpu.memory_space<vmem>>, vector<2x1xf32>
      tpu.vector_store %arg8[%c0_20, %c0_21], %23 {strides = array<i32>} : memref<2x1xf32, #tpu.memory_space<vmem>>, vector<2x1xf32>,
    } else {
    }
    %c0 = arith.constant 0 : index
    %c0_1 = arith.constant 0 : index
    %c0_2 = arith.constant 0 : index
    %3 = vector.load %arg3[%c0, %c0_1, %c0_2] : memref<2x8x768xbf16, #tpu.memory_space<vmem>>, vector<2x8x768xbf16>
    %4 = arith.extf %3 : vector<2x8x768xbf16> to vector<2x8x768xf32>
    %c0_3 = arith.constant 0 : index
    %c0_4 = arith.constant 0 : index
    %5 = vector.load %arg2[%c0_3, %c0_4] : memref<2x8xf32, #tpu.memory_space<vmem>>, vector<2x8xf32>
    %c0_5 = arith.constant 0 : index
    %c0_6 = arith.constant 0 : index
    %6 = vector.load %arg7[%c0_5, %c0_6] : memref<2x768xf32, #tpu.memory_space<vmem>>, vector<2x768xf32>
    %7 = vector.shape_cast %5 : vector<2x8xf32> to vector<2x8x1xf32>
    %8 = vector.broadcast %7 : vector<2x8x1xf32> to vector<2x8x768xf32>
    %9 = arith.mulf %4, %8 : vector<2x8x768xf32>
    %cst = arith.constant dense<0.000000e+00> : vector<2x768xf32>
    %10 = vector.multi_reduction <add>, %9, %cst [1] : vector<2x8x768xf32> to vector<2x768xf32>
    %11 = arith.addf %6, %10 : vector<2x768xf32>
    %c0_7 = arith.constant 0 : index
    %c0_8 = arith.constant 0 : index
    %12 = vector.load %arg7[%c0_7, %c0_8] : memref<2x768xf32, #tpu.memory_space<vmem>>, vector<2x768xf32>
    tpu.vector_store %arg7[%c0_7, %c0_8], %11 {strides = array<i32>} : memref<2x768xf32, #tpu.memory_space<vmem>>, vector<2x768xf32>,
    %c0_9 = arith.constant 0 : index
    %c0_10 = arith.constant 0 : index
    %13 = vector.load %arg8[%c0_9, %c0_10] : memref<2x1xf32, #tpu.memory_space<vmem>>, vector<2x1xf32>
    %cst_11 = arith.constant dense<0.000000e+00> : vector<2xf32>
    %14 = vector.multi_reduction <add>, %5, %cst_11 [1] : vector<2x8xf32> to vector<2xf32>
    %15 = vector.shape_cast %14 : vector<2xf32> to vector<2x1xf32>
    %16 = arith.addf %13, %15 : vector<2x1xf32>
    %c0_12 = arith.constant 0 : index
    %c0_13 = arith.constant 0 : index
    %17 = vector.load %arg8[%c0_12, %c0_13] : memref<2x1xf32, #tpu.memory_space<vmem>>, vector<2x1xf32>
    tpu.vector_store %arg8[%c0_12, %c0_13], %16 {strides = array<i32>} : memref<2x1xf32, #tpu.memory_space<vmem>>, vector<2x1xf32>,
    %c0_i32_14 = arith.constant 0 : i32
    %18 = arith.cmpi eq, %arg1, %c0_i32_14 : i32
    %19 = arith.extui %18 : i1 to i32
    %c0_i32_15 = arith.constant 0 : i32
    %20 = arith.cmpi ne, %19, %c0_i32_15 : i32
    scf.if %20 {
      %c0_16 = arith.constant 0 : index
      %c0_17 = arith.constant 0 : index
      %21 = vector.load %arg7[%c0_16, %c0_17] : memref<2x768xf32, #tpu.memory_space<vmem>>, vector<2x768xf32>
      %c0_18 = arith.constant 0 : index
      %c0_19 = arith.constant 0 : index
      %22 = vector.load %arg8[%c0_18, %c0_19] : memref<2x1xf32, #tpu.memory_space<vmem>>, vector<2x1xf32>
      %23 = tpu.reciprocal %22 : vector<2x1xf32> -> vector<2x1xf32>
      %24 = vector.broadcast %23 : vector<2x1xf32> to vector<2x768xf32>
      %25 = arith.mulf %21, %24 : vector<2x768xf32>
      %c0_20 = arith.constant 0 : index
      %c0_21 = arith.constant 0 : index
      %26 = vector.load %arg4[%c0_20, %c0_21] : memref<768x128xf32, #tpu.memory_space<vmem>>, vector<768x128xf32>
      %cst_22 = arith.constant dense<0.000000e+00> : vector<2x128xf32>
      %27 = tpu.matmul %25, %26, %cst_22 {dimension_numbers = #tpu.dot_dimension_numbers<[1], [0], [0], [1], [0, 0, 1, 1], [], []>} : vector<2x768xf32>, vector<768x128xf32>, vector<2x128xf32> -> vector<2x128xf32>
      %c0_23 = arith.constant 0 : index
      %c0_24 = arith.constant 0 : index
      %28 = vector.load %arg5[%c0_23, %c0_24] : memref<1x128xf32, #tpu.memory_space<vmem>>, vector<1x128xf32>
      %29 = vector.broadcast %28 : vector<1x128xf32> to vector<2x128xf32>
      %30 = arith.addf %27, %29 : vector<2x128xf32>
      %c0_25 = arith.constant 0 : index
      %c0_26 = arith.constant 0 : index
      %31 = vector.load %arg6[%c0_25, %c0_26] : memref<2x128xf32, #tpu.memory_space<vmem>>, vector<2x128xf32>
      tpu.vector_store %arg6[%c0_25, %c0_26], %30 {strides = array<i32>} : memref<2x128xf32, #tpu.memory_space<vmem>>, vector<2x128xf32>,
    } else {
    }
    return
  }
  func.func @transform_0(%arg0: i32, %arg1: i32) -> (i32, i32) {
    %c0_i32 = arith.constant 0 : i32
    return %arg0, %arg1 : i32, i32
  }
  func.func @transform_1(%arg0: i32, %arg1: i32) -> (i32, i32, i32) {
    %c0_i32 = arith.constant 0 : i32
    %c0_i32_0 = arith.constant 0 : i32
    return %arg0, %arg1, %c0_i32 : i32, i32, i32
  }
  func.func @transform_2(%arg0: i32, %arg1: i32) -> (i32, i32) {
    %c0_i32 = arith.constant 0 : i32
    %c0_i32_0 = arith.constant 0 : i32
    %c0_i32_1 = arith.constant 0 : i32
    return %c0_i32, %c0_i32_0 : i32, i32
  }
  func.func @transform_3(%arg0: i32, %arg1: i32) -> (i32, i32) {
    %c0_i32 = arith.constant 0 : i32
    %c0_i32_0 = arith.constant 0 : i32
    %c0_i32_1 = arith.constant 0 : i32
    return %c0_i32, %c0_i32_0 : i32, i32
  }
  func.func @transform_4(%arg0: i32, %arg1: i32) -> (i32, i32) {
    %c0_i32 = arith.constant 0 : i32
    %c0_i32_0 = arith.constant 0 : i32
    return %arg0, %c0_i32 : i32, i32
  }
}

</mosaic_0001>

<llo_original>
// kernel: tpu_custom_call.1
$region0: #{tpu_custom_call.1}
  #allocation0 [shape = 'u32[]', space=smem, size = 0x4, offset = 0x4, fixed_abs, tag = 'smem constant byte address 0x4 - core index']
  #allocation1 [shape = 'u32[72,128]{1,0:T(1,128)}', space=vmem, size = 0x9000, scoped, tag = 'internal scratch']
  #allocation2 [shape = 'f32[2,768]{1,0:T(2,128)}', space=vmem, size = 0x1800, scoped, tag = 'scratch operand']
  #allocation3 [shape = 'f32[2,1]{1,0:T(2,128)}', space=vmem, size = 0x400, scoped, tag = 'scratch operand']
  %s0 = inlined_call_operand.hbm [shape: f32[2,8], index: 0, kind: input, shape index: {}]
  %s1 = inlined_call_operand.hbm [shape: bf16[2,8,768], index: 1, kind: input, shape index: {}]
  %s2 = inlined_call_operand.hbm [shape: f32[768,128], index: 2, kind: input, shape index: {}]
  %s3 = inlined_call_operand.vmem [shape: f32[1,128], index: 3, kind: input, shape index: {}]
  %s4 = inlined_call_operand.hbm [shape: f32[2,128], index: 4, kind: output, shape index: {}]
  %s5 = sld [smem:[#allocation0]]
  $region46: #{tpu_custom_call.1} parent=0
    _
  %s7 = ssub.s32 1, %s5
  %s8 = scalar_select 0, %s7, %s5
  $region1: #{tpu_custom_call.1} parent=0
    #allocation4 [shape = 'u8[1024]{0}', space=vmem, size = 0x400, scoped, tag = 'input window, operand 0, single buffered']
    #allocation5 [shape = 's32[1]{0}', space=sflag, size = 0x4, scoped, tag = 'scoped memory for tpu_custom_call.1']
    #allocation6 [shape = 's32[1]{0}', space=sflag, size = 0x4, scoped, tag = 'scoped memory for tpu_custom_call.1']
    #allocation7 [shape = 'u8[24576]{0}', space=vmem, size = 0x6000, scoped, tag = 'input window, operand 1, single buffered']
    #allocation8 [shape = 's32[1]{0}', space=sflag, size = 0x4, scoped, tag = 'scoped memory for tpu_custom_call.1']
    #allocation9 [shape = 'u8[393216]{0}', space=vmem, size = 0x60000, scoped, tag = 'input window, operand 2, single buffered']
    #allocation10 [shape = 'u8[1024]{0}', space=vmem, size = 0x400, scoped, tag = 'output window, operand 0, single buffered']
    %9 = vsyncpa [#allocation5], 0
    %10 = vsyncpa [#allocation8], 0
    %11 = vsyncpa [#allocation6], 0
    // Predicated region
    $region2: #{tpu_custom_call.1} parent=1 // pred_check
      _
    $region3: #{tpu_custom_call.1} parent=1 // pred_check_branch
      %13 = sbr.rel (0) target = $region5
    $region4: #{tpu_custom_call.1} parent=1 // pred_region
      %15 = vsyncadd [#allocation5], 0
      %s17 = sshll.u32 %s0, 4
      %s18 = int_to_ptr.hbm [resolvable:$true] %s17
      %s19 = sshll.u32 [#allocation4], 4
      %s20 = int_to_ptr.vmem [resolvable:$true] %s19
      %22 = dma.hbm_to_vmem [thread:$0]  %s18, 32, %s20, [#allocation5]
    $region5: #{tpu_custom_call.1} parent=1 // pred_fallthru
      _
    // Predicated region
    $region6: #{tpu_custom_call.1} parent=1 // pred_check
      _
    $region7: #{tpu_custom_call.1} parent=1 // pred_check_branch
      %24 = sbr.rel (0) target = $region9
    $region8: #{tpu_custom_call.1} parent=1 // pred_region
      %26 = vsyncadd [#allocation8], 0
      %s27 = sshll.u32 %s1, 4
      %s28 = int_to_ptr.hbm [resolvable:$true] %s27
      %s29 = sshll.u32 [#allocation7], 4
      %s30 = int_to_ptr.vmem [resolvable:$true] %s29
      %35 = dma.hbm_to_vmem [thread:$0]  %s28, 768, %s30, [#allocation8], 384, 384, 24
    $region9: #{tpu_custom_call.1} parent=1 // pred_fallthru
      _
    // Predicated region
    $region10: #{tpu_custom_call.1} parent=1 // pred_check
      _
    $region11: #{tpu_custom_call.1} parent=1 // pred_check_branch
      %37 = sbr.rel (0) target = $region13
    $region12: #{tpu_custom_call.1} parent=1 // pred_region
      %39 = vsyncadd [#allocation8], 0
      %s40 = sshll.u32 %s2, 4
      %s41 = int_to_ptr.hbm [resolvable:$true] %s40
      %s42 = sshll.u32 [#allocation9], 4
      %s43 = int_to_ptr.vmem [resolvable:$true] %s42
      %48 = dma.hbm_to_vmem [thread:$0]  %s41, 12288, %s43, [#allocation8], 128, 128, 8
    $region13: #{tpu_custom_call.1} parent=1 // pred_fallthru
      _
    // Predicated region
    $region14: #{tpu_custom_call.1} parent=1 // pred_check
      _
    $region15: #{tpu_custom_call.1} parent=1 // pred_check_branch
      %50 = sbr.rel (0) target = $region17
    $region16: #{tpu_custom_call.1} parent=1 // pred_region
      _
    $region17: #{tpu_custom_call.1} parent=1 // pred_fallthru
      _
    // Predicated region
    $region18: #{tpu_custom_call.1} parent=1 // pred_check
      _
    $region19: #{tpu_custom_call.1} parent=1 // pred_check_branch
      %52 = sbr.rel (0) target = $region21
    $region20: #{tpu_custom_call.1} parent=1 // pred_region
      %54 = dma.done [#allocation5], 32
    $region21: #{tpu_custom_call.1} parent=1 // pred_fallthru
      _
    // Predicated region
    $region22: #{tpu_custom_call.1} parent=1 // pred_check
      _
    $region23: #{tpu_custom_call.1} parent=1 // pred_check_branch
      %56 = sbr.rel (0) target = $region25
    $region24: #{tpu_custom_call.1} parent=1 // pred_region
      %58 = dma.done [#allocation8], 768
    $region25: #{tpu_custom_call.1} parent=1 // pred_fallthru
      _
    // Predicated region
    $region26: #{tpu_custom_call.1} parent=1 // pred_check
      _
    $region27: #{tpu_custom_call.1} parent=1 // pred_check_branch
      %60 = sbr.rel (0) target = $region29
    $region28: #{tpu_custom_call.1} parent=1 // pred_region
      %62 = dma.done [#allocation8], 12288
    $region29: #{tpu_custom_call.1} parent=1 // pred_fallthru
      _
    %p63 = scmp.eq.s32.totalorder 0, 0
    // Predicated region
    $region30: #{tpu_custom_call.1} parent=1 // pred_check
      %p64 = pneg %p63
    $region31: #{tpu_custom_call.1} parent=1 // pred_check_branch
      %66 = sbr.rel (%p64) target = $region33
    $region32: #{tpu_custom_call.1} parent=1 // pred_region
      %67 = vst [vmem:[#allocation2] sm:$0xff] 0.0
      %68 = vst [vmem:[#allocation2 + $0x8] sm:$0xf] 0.0
      %vm69 = vcmask 1024
      %70 = vst.msk [vmem:[#allocation3] sm:$0x3] %vm69, 0.0
    $region33: #{tpu_custom_call.1} parent=1 // pred_fallthru
      _
    %v71 = vld [vmem:[#allocation7] sm:$0xff]
    %v72 = vld [vmem:[#allocation7 + $0x8] sm:$0xff]
    %v73 = vld [vmem:[#allocation7 + $0x10] sm:$0xff]
    %v74 = vld [vmem:[#allocation7 + $0x18] sm:$0xff]
    %v75 = vld [vmem:[#allocation7 + $0x20] sm:$0xff]
    %v76 = vld [vmem:[#allocation7 + $0x28] sm:$0xff]
    %v77 = vunpack.c.l.bf16 %v71
    %v78 = vunpack.c.h.bf16 %v71
    %v79 = vunpack.c.l.bf16 %v72
    %v80 = vunpack.c.h.bf16 %v72
    %v81 = vunpack.c.l.bf16 %v73
    %v82 = vunpack.c.h.bf16 %v73
    %v83 = vunpack.c.l.bf16 %v74
    %v84 = vunpack.c.h.bf16 %v74
    %v85 = vunpack.c.l.bf16 %v75
    %v86 = vunpack.c.h.bf16 %v75
    %v87 = vunpack.c.l.bf16 %v76
    %v88 = vunpack.c.h.bf16 %v76
    %v89 = vld [vmem:[#allocation4] sm:$0x3]
    %v90 = vld [vmem:[#allocation2] sm:$0xff]
    %v91 = vld [vmem:[#allocation2 + $0x8] sm:$0xf]
    %v92 = vperm.slane %v89, 0
    %v93 = vlaneseq
    %v94 = vshrl.u32 %v93, 7
    %96 = vset.pattern.permute.xlu0 %v94
    %97 = vperm.xlu0 %96, %v92
    %v98 = vpop.permute.xlu0 %97
    %v99 = vperm.slane %v89, 1
    %v100 = vlaneseq
    %v101 = vshrl.u32 %v100, 7
    %103 = vset.pattern.permute.xlu0 %v101
    %104 = vperm.xlu0 %103, %v99
    %v105 = vpop.permute.xlu0 %104
    %v106 = vmul.f32 %v77, %v98
    %v107 = vmul.f32 %v78, %v98
    %v108 = vmul.f32 %v79, %v98
    %v109 = vmul.f32 %v80, %v98
    %v110 = vmul.f32 %v81, %v98
    %v111 = vmul.f32 %v82, %v98
    %v112 = vmul.f32 %v83, %v105
    %v113 = vmul.f32 %v84, %v105
    %v114 = vmul.f32 %v85, %v105
    %v115 = vmul.f32 %v86, %v105
    %v116 = vmul.f32 %v87, %v105
    %v117 = vmul.f32 %v88, %v105
    %v118 = vrot.slane %v106, 4
    %v119 = vadd.f32 %v106, %v118
    %v120 = vrot.slane %v119, 2
    %v121 = vadd.f32 %v119, %v120
    %v122 = vrot.slane %v121, 1
    %v123 = vadd.f32 %v121, %v122
    %v124 = vrot.slane %v107, 4
    %v125 = vadd.f32 %v107, %v124
    %v126 = vrot.slane %v125, 2
    %v127 = vadd.f32 %v125, %v126
    %v128 = vrot.slane %v127, 1
    %v129 = vadd.f32 %v127, %v128
    %v130 = vrot.slane %v108, 4
    %v131 = vadd.f32 %v108, %v130
    %v132 = vrot.slane %v131, 2
    %v133 = vadd.f32 %v131, %v132
    %v134 = vrot.slane %v133, 1
    %v135 = vadd.f32 %v133, %v134
    %v136 = vrot.slane %v109, 4
    %v137 = vadd.f32 %v109, %v136
    %v138 = vrot.slane %v137, 2
    %v139 = vadd.f32 %v137, %v138
    %v140 = vrot.slane %v139, 1
    %v141 = vadd.f32 %v139, %v140
    %v142 = vrot.slane %v110, 4
    %v143 = vadd.f32 %v110, %v142
    %v144 = vrot.slane %v143, 2
    %v145 = vadd.f32 %v143, %v144
    %v146 = vrot.slane %v145, 1
    %v147 = vadd.f32 %v145, %v146
    %v148 = vrot.slane %v111, 4
    %v149 = vadd.f32 %v111, %v148
    %v150 = vrot.slane %v149, 2
    %v151 = vadd.f32 %v149, %v150
    %v152 = vrot.slane %v151, 1
    %v153 = vadd.f32 %v151, %v152
    %v154 = vrot.slane %v112, 4
    %v155 = vadd.f32 %v112, %v154
    %v156 = vrot.slane %v155, 2
    %v157 = vadd.f32 %v155, %v156
    %v158 = vrot.slane %v157, 1
    %v159 = vadd.f32 %v157, %v158
    %v160 = vrot.slane %v113, 4
    %v161 = vadd.f32 %v113, %v160
    %v162 = vrot.slane %v161, 2
    %v163 = vadd.f32 %v161, %v162
    %v164 = vrot.slane %v163, 1
    %v165 = vadd.f32 %v163, %v164
    %v166 = vrot.slane %v114, 4
    %v167 = vadd.f32 %v114, %v166
    %v168 = vrot.slane %v167, 2
    %v169 = vadd.f32 %v167, %v168
    %v170 = vrot.slane %v169, 1
    %v171 = vadd.f32 %v169, %v170
    %v172 = vrot.slane %v115, 4
    %v173 = vadd.f32 %v115, %v172
    %v174 = vrot.slane %v173, 2
    %v175 = vadd.f32 %v173, %v174
    %v176 = vrot.slane %v175, 1
    %v177 = vadd.f32 %v175, %v176
    %v178 = vrot.slane %v116, 4
    %v179 = vadd.f32 %v116, %v178
    %v180 = vrot.slane %v179, 2
    %v181 = vadd.f32 %v179, %v180
    %v182 = vrot.slane %v181, 1
    %v183 = vadd.f32 %v181, %v182
    %v184 = vrot.slane %v117, 4
    %v185 = vadd.f32 %v117, %v184
    %v186 = vrot.slane %v185, 2
    %v187 = vadd.f32 %v185, %v186
    %v188 = vrot.slane %v187, 1
    %v189 = vadd.f32 %v187, %v188
    %v202 = vrot.slane %v129, 6
    %v203 = vrot.slane %v135, 4
    %v204 = vrot.slane %v141, 2
    %v205 = vrot.slane %v153, 6
    %v206 = vrot.slane %v165, 6
    %v207 = vrot.slane %v171, 4
    %v208 = vrot.slane %v177, 2
    %v209 = vrot.slane %v189, 6
    %vm210 = vcmask 1041408
    %v211 = vsel %vm210, %v123, %v202
    %vm212 = vcmask 1045508
    %v213 = vsel %vm212, %v203, %v204
    %vm214 = vcmask 1043456
    %v215 = vsel %vm214, %v211, %v213
    %v216 = vsel %vm210, %v147, %v205
    %v217 = vsel %vm210, %v159, %v206
    %v218 = vsel %vm212, %v207, %v208
    %v219 = vsel %vm214, %v217, %v218
    %v220 = vsel %vm210, %v183, %v209
    %vm221 = vcmask 1044484
    %v222 = vsel %vm221, %v215, %v215
    %vm223 = vcmask 1046534
    %v224 = vsel %vm223, %v215, %v222
    %v225 = vrot.slane %v219, 7
    %vm226 = vcmask 1041409
    %v227 = vsel %vm226, %v225, %v224
    %vm228 = vcmask 1043459
    %v229 = vsel %vm228, %v225, %v227
    %vm230 = vcmask 1045509
    %v231 = vsel %vm230, %v225, %v229
    %vm232 = vcmask 1047559
    %v233 = vsel %vm232, %v225, %v231
    %v234 = vsel %vm221, %v216, %v216
    %v235 = vsel %vm223, %v216, %v234
    %v236 = vrot.slane %v220, 7
    %v237 = vsel %vm226, %v236, %v235
    %v238 = vsel %vm228, %v236, %v237
    %v239 = vsel %vm230, %v236, %v238
    %v240 = vsel %vm232, %v236, %v239
    %v243 = vadd.f32 %v90, %v233
    %v244 = vadd.f32 %v91, %v240
    %245 = vst [vmem:[#allocation2] sm:$0xff] %v243
    %246 = vst [vmem:[#allocation2 + $0x8] sm:$0xf] %v244
    %v247 = vld [vmem:[#allocation3] sm:$0x3]
    %vm248 = vcmask 58368
    %v249 = vsel %vm248, %v89, 0.0
    %250 = vadd.xlane.f32.xlu0 %v249
    %v251 = vpop.xlane.xlu0 %250
    %v252 = vadd.f32 %v247, %v251
    %vm253 = vcmask 1024
    %254 = vst.msk [vmem:[#allocation3] sm:$0x3] %vm253, %v252
    // Predicated region
    $region34: #{tpu_custom_call.1} parent=1 // pred_check
      %p255 = pneg %p63
    $region35: #{tpu_custom_call.1} parent=1 // pred_check_branch
      %257 = sbr.rel (%p255) target = $region37
    $region36: #{tpu_custom_call.1} parent=1 // pred_region
      %v258 = vld [vmem:[#allocation2] sm:$0xff]
      %v259 = vld [vmem:[#allocation2 + $0x8] sm:$0xf]
      %v260 = vld [vmem:[#allocation3] sm:$0x3]
      %v261 = vrcp.pop %v260
      %v262 = vmul.f32 %v260, %v261
      %v263 = vsub.f32 1.0, %v262
      %v264 = vmul.f32 %v261, %v263
      %v265 = vadd.f32 %v261, %v264
      %vm266 = vweird.f32 %v260
      %vm267 = vweird.f32 %v261
      %vm268 = vmor %vm266, %vm267
      %v269 = vsel %vm268, %v261, %v265
      %v270 = vand.u32 2147483647, %v260
      %vm271 = vcmp.eq.f32.partialorder %v270, 8.507059e+37
      %v272 = vand.u32 %v260, 2147483648
      %v273 = vor.u32 1.1754944e-38, %v272
      %v274 = vsel %vm271, %v273, %v269
      %276 = vset.pattern.permute.xlu0 0
      %277 = vperm.xlu0 %276, %v274
      %v278 = vpop.permute.xlu0 %277
      %v280 = vunpack.c.l.s4 269488144
      %v281 = vunpack.c.0.s8 %v280
      %v282 = vperm.slane %v278, %v281
      %v284 = vmul.f32 %v258, %v282
      %v285 = vmul.f32 %v259, %v282
      %v286 = vld [vmem:[#allocation9] sm:$0xff]
      %v287 = vld [vmem:[#allocation9 + $0x8] sm:$0xff]
      %v288 = vld [vmem:[#allocation9 + $0x10] sm:$0xff]
      %v289 = vld [vmem:[#allocation9 + $0x18] sm:$0xff]
      %v290 = vld [vmem:[#allocation9 + $0x20] sm:$0xff]
      %v291 = vld [vmem:[#allocation9 + $0x28] sm:$0xff]
      %v292 = vld [vmem:[#allocation9 + $0x30] sm:$0xff]
      %v293 = vld [vmem:[#allocation9 + $0x38] sm:$0xff]
      %v294 = vld [vmem:[#allocation9 + $0x40] sm:$0xff]
      %v295 = vld [vmem:[#allocation9 + $0x48] sm:$0xff]
      %v296 = vld [vmem:[#allocation9 + $0x50] sm:$0xff]
      %v297 = vld [vmem:[#allocation9 + $0x58] sm:$0xff]
      %v298 = vld [vmem:[#allocation9 + $0x60] sm:$0xff]
      %v299 = vld [vmem:[#allocation9 + $0x68] sm:$0xff]
      %v300 = vld [vmem:[#allocation9 + $0x70] sm:$0xff]
      %v301 = vld [vmem:[#allocation9 + $0x78] sm:$0xff]
      %v302 = vld [vmem:[#allocation9 + $0x80] sm:$0xff]
      %v303 = vld [vmem:[#allocation9 + $0x88] sm:$0xff]
      %v304 = vld [vmem:[#allocation9 + $0x90] sm:$0xff]
      %v305 = vld [vmem:[#allocation9 + $0x98] sm:$0xff]
      %v306 = vld [vmem:[#allocation9 + $0xa0] sm:$0xff]
      %v307 = vld [vmem:[#allocation9 + $0xa8] sm:$0xff]
      %v308 = vld [vmem:[#allocation9 + $0xb0] sm:$0xff]
      %v309 = vld [vmem:[#allocation9 + $0xb8] sm:$0xff]
      %v310 = vld [vmem:[#allocation9 + $0xc0] sm:$0xff]
      %v311 = vld [vmem:[#allocation9 + $0xc8] sm:$0xff]
      %v312 = vld [vmem:[#allocation9 + $0xd0] sm:$0xff]
      %v313 = vld [vmem:[#allocation9 + $0xd8] sm:$0xff]
      %v314 = vld [vmem:[#allocation9 + $0xe0] sm:$0xff]
      %v315 = vld [vmem:[#allocation9 + $0xe8] sm:$0xff]
      %v316 = vld [vmem:[#allocation9 + $0xf0] sm:$0xff]
      %v317 = vld [vmem:[#allocation9 + $0xf8] sm:$0xff]
      %v318 = vld [vmem:[#allocation9 + $0x100] sm:$0xff]
      %v319 = vld [vmem:[#allocation9 + $0x108] sm:$0xff]
      %v320 = vld [vmem:[#allocation9 + $0x110] sm:$0xff]
      %v321 = vld [vmem:[#allocation9 + $0x118] sm:$0xff]
      %v322 = vld [vmem:[#allocation9 + $0x120] sm:$0xff]
      %v323 = vld [vmem:[#allocation9 + $0x128] sm:$0xff]
      %v324 = vld [vmem:[#allocation9 + $0x130] sm:$0xff]
      %v325 = vld [vmem:[#allocation9 + $0x138] sm:$0xff]
      %v326 = vld [vmem:[#allocation9 + $0x140] sm:$0xff]
      %v327 = vld [vmem:[#allocation9 + $0x148] sm:$0xff]
      %v328 = vld [vmem:[#allocation9 + $0x150] sm:$0xff]
      %v329 = vld [vmem:[#allocation9 + $0x158] sm:$0xff]
      %v330 = vld [vmem:[#allocation9 + $0x160] sm:$0xff]
      %v331 = vld [vmem:[#allocation9 + $0x168] sm:$0xff]
      %v332 = vld [vmem:[#allocation9 + $0x170] sm:$0xff]
      %v333 = vld [vmem:[#allocation9 + $0x178] sm:$0xff]
      %v334 = vld [vmem:[#allocation9 + $0x180] sm:$0xff]
      %v335 = vld [vmem:[#allocation9 + $0x188] sm:$0xff]
      %v336 = vld [vmem:[#allocation9 + $0x190] sm:$0xff]
      %v337 = vld [vmem:[#allocation9 + $0x198] sm:$0xff]
      %v338 = vld [vmem:[#allocation9 + $0x1a0] sm:$0xff]
      %v339 = vld [vmem:[#allocation9 + $0x1a8] sm:$0xff]
      %v340 = vld [vmem:[#allocation9 + $0x1b0] sm:$0xff]
      %v341 = vld [vmem:[#allocation9 + $0x1b8] sm:$0xff]
      %v342 = vld [vmem:[#allocation9 + $0x1c0] sm:$0xff]
      %v343 = vld [vmem:[#allocation9 + $0x1c8] sm:$0xff]
      %v344 = vld [vmem:[#allocation9 + $0x1d0] sm:$0xff]
      %v345 = vld [vmem:[#allocation9 + $0x1d8] sm:$0xff]
      %v346 = vld [vmem:[#allocation9 + $0x1e0] sm:$0xff]
      %v347 = vld [vmem:[#allocation9 + $0x1e8] sm:$0xff]
      %v348 = vld [vmem:[#allocation9 + $0x1f0] sm:$0xff]
      %v349 = vld [vmem:[#allocation9 + $0x1f8] sm:$0xff]
      %v350 = vld [vmem:[#allocation9 + $0x200] sm:$0xff]
      %v351 = vld [vmem:[#allocation9 + $0x208] sm:$0xff]
      %v352 = vld [vmem:[#allocation9 + $0x210] sm:$0xff]
      %v353 = vld [vmem:[#allocation9 + $0x218] sm:$0xff]
      %v354 = vld [vmem:[#allocation9 + $0x220] sm:$0xff]
      %v355 = vld [vmem:[#allocation9 + $0x228] sm:$0xff]
      %v356 = vld [vmem:[#allocation9 + $0x230] sm:$0xff]
      %v357 = vld [vmem:[#allocation9 + $0x238] sm:$0xff]
      %v358 = vld [vmem:[#allocation9 + $0x240] sm:$0xff]
      %v359 = vld [vmem:[#allocation9 + $0x248] sm:$0xff]
      %v360 = vld [vmem:[#allocation9 + $0x250] sm:$0xff]
      %v361 = vld [vmem:[#allocation9 + $0x258] sm:$0xff]
      %v362 = vld [vmem:[#allocation9 + $0x260] sm:$0xff]
      %v363 = vld [vmem:[#allocation9 + $0x268] sm:$0xff]
      %v364 = vld [vmem:[#allocation9 + $0x270] sm:$0xff]
      %v365 = vld [vmem:[#allocation9 + $0x278] sm:$0xff]
      %v366 = vld [vmem:[#allocation9 + $0x280] sm:$0xff]
      %v367 = vld [vmem:[#allocation9 + $0x288] sm:$0xff]
      %v368 = vld [vmem:[#allocation9 + $0x290] sm:$0xff]
      %v369 = vld [vmem:[#allocation9 + $0x298] sm:$0xff]
      %v370 = vld [vmem:[#allocation9 + $0x2a0] sm:$0xff]
      %v371 = vld [vmem:[#allocation9 + $0x2a8] sm:$0xff]
      %v372 = vld [vmem:[#allocation9 + $0x2b0] sm:$0xff]
      %v373 = vld [vmem:[#allocation9 + $0x2b8] sm:$0xff]
      %v374 = vld [vmem:[#allocation9 + $0x2c0] sm:$0xff]
      %v375 = vld [vmem:[#allocation9 + $0x2c8] sm:$0xff]
      %v376 = vld [vmem:[#allocation9 + $0x2d0] sm:$0xff]
      %v377 = vld [vmem:[#allocation9 + $0x2d8] sm:$0xff]
      %v378 = vld [vmem:[#allocation9 + $0x2e0] sm:$0xff]
      %v379 = vld [vmem:[#allocation9 + $0x2e8] sm:$0xff]
      %v380 = vld [vmem:[#allocation9 + $0x2f0] sm:$0xff]
      %v381 = vld [vmem:[#allocation9 + $0x2f8] sm:$0xff]
      %v382 = vld [vmem:[%s3] sm:$0x1]
      %v384 = vperm.slane %v382, 0
      %388 = vst [vmem:[#allocation1] ss:$4 sm:$0xff] %v284
      %s389 = scalar_lea.vmem [#allocation1], 32
      %390 = vst [vmem:[%s389] ss:$4 sm:$0xff] %v285
      %v391 = vld.sshfl [vmem:[#allocation1] sm:$0xff pattern:$0x73625140]
      %v392 = vld.sshfl [vmem:[#allocation1 + $0x8] sm:$0xff pattern:$0x73625140]
      %v393 = vld.sshfl [vmem:[#allocation1 + $0x10] sm:$0xff pattern:$0x73625140]
      %v394 = vld.sshfl [vmem:[#allocation1 + $0x18] sm:$0xff pattern:$0x73625140]
      %v395 = vld.sshfl [vmem:[#allocation1 + $0x20] sm:$0xff pattern:$0x73625140]
      %v396 = vld.sshfl [vmem:[#allocation1 + $0x28] sm:$0xff pattern:$0x73625140]
      %403 = vmatpush.msra.mxu0 %v301
      %404 = vmatpush.msra.mxu0 %v300
      %405 = vmatpush.msra.mxu0 %v299
      %406 = vmatpush.msra.mxu0 %v298
      %407 = vmatpush.msra.mxu0 %v297
      %408 = vmatpush.msra.mxu0 %v296
      %409 = vmatpush.msra.mxu0 %v295
      %410 = vmatpush.msra.mxu0 %v294
      %411 = vmatpush.msra.mxu0 %v293
      %412 = vmatpush.msra.mxu0 %v292
      %413 = vmatpush.msra.mxu0 %v291
      %414 = vmatpush.msra.mxu0 %v290
      %415 = vmatpush.msra.mxu0 %v289
      %416 = vmatpush.msra.mxu0 %v288
      %417 = vmatpush.msra.mxu0 %v287
      %418 = vmatpush.msra.mxu0 %v286
      %419 = vmatmul.f32.gmra.mxu0 %v391
      %v420 = vpop.f32.mrf.mxu0
      %v421 = vadd.f32 %v384, %v420
      %422 = vdwg.mxu0
      %423 = vmatpush.msra.mxu0 %v317
      %424 = vmatpush.msra.mxu0 %v316
      %425 = vmatpush.msra.mxu0 %v315
      %426 = vmatpush.msra.mxu0 %v314
      %427 = vmatpush.msra.mxu0 %v313
      %428 = vmatpush.msra.mxu0 %v312
      %429 = vmatpush.msra.mxu0 %v311
      %430 = vmatpush.msra.mxu0 %v310
      %431 = vmatpush.msra.mxu0 %v309
      %432 = vmatpush.msra.mxu0 %v308
      %433 = vmatpush.msra.mxu0 %v307
      %434 = vmatpush.msra.mxu0 %v306
      %435 = vmatpush.msra.mxu0 %v305
      %436 = vmatpush.msra.mxu0 %v304
      %437 = vmatpush.msra.mxu0 %v303
      %438 = vmatpush.msra.mxu0 %v302
      %439 = vmatmul.f32.gmra.mxu0 %v392
      %v440 = vpop.f32.mrf.mxu0
      %v441 = vadd.f32 %v421, %v440
      %442 = vdwg.mxu0
      %443 = vmatpush.msra.mxu0 %v333
      %444 = vmatpush.msra.mxu0 %v332
      %445 = vmatpush.msra.mxu0 %v331
      %446 = vmatpush.msra.mxu0 %v330
      %447 = vmatpush.msra.mxu0 %v329
      %448 = vmatpush.msra.mxu0 %v328
      %449 = vmatpush.msra.mxu0 %v327
      %450 = vmatpush.msra.mxu0 %v326
      %451 = vmatpush.msra.mxu0 %v325
      %452 = vmatpush.msra.mxu0 %v324
      %453 = vmatpush.msra.mxu0 %v323
      %454 = vmatpush.msra.mxu0 %v322
      %455 = vmatpush.msra.mxu0 %v321
      %456 = vmatpush.msra.mxu0 %v320
      %457 = vmatpush.msra.mxu0 %v319
      %458 = vmatpush.msra.mxu0 %v318
      %459 = vmatmul.f32.gmra.mxu0 %v393
      %v460 = vpop.f32.mrf.mxu0
      %v461 = vadd.f32 %v441, %v460
      %462 = vdwg.mxu0
      %463 = vmatpush.msra.mxu0 %v349
      %464 = vmatpush.msra.mxu0 %v348
      %465 = vmatpush.msra.mxu0 %v347
      %466 = vmatpush.msra.mxu0 %v346
      %467 = vmatpush.msra.mxu0 %v345
      %468 = vmatpush.msra.mxu0 %v344
      %469 = vmatpush.msra.mxu0 %v343
      %470 = vmatpush.msra.mxu0 %v342
      %471 = vmatpush.msra.mxu0 %v341
      %472 = vmatpush.msra.mxu0 %v340
      %473 = vmatpush.msra.mxu0 %v339
      %474 = vmatpush.msra.mxu0 %v338
      %475 = vmatpush.msra.mxu0 %v337
      %476 = vmatpush.msra.mxu0 %v336
      %477 = vmatpush.msra.mxu0 %v335
      %478 = vmatpush.msra.mxu0 %v334
      %479 = vmatmul.f32.gmra.mxu0 %v394
      %v480 = vpop.f32.mrf.mxu0
      %v481 = vadd.f32 %v461, %v480
      %482 = vdwg.mxu0
      %483 = vmatpush.msra.mxu0 %v365
      %484 = vmatpush.msra.mxu0 %v364
      %485 = vmatpush.msra.mxu0 %v363
      %486 = vmatpush.msra.mxu0 %v362
      %487 = vmatpush.msra.mxu0 %v361
      %488 = vmatpush.msra.mxu0 %v360
      %489 = vmatpush.msra.mxu0 %v359
      %490 = vmatpush.msra.mxu0 %v358
      %491 = vmatpush.msra.mxu0 %v357
      %492 = vmatpush.msra.mxu0 %v356
      %493 = vmatpush.msra.mxu0 %v355
      %494 = vmatpush.msra.mxu0 %v354
      %495 = vmatpush.msra.mxu0 %v353
      %496 = vmatpush.msra.mxu0 %v352
      %497 = vmatpush.msra.mxu0 %v351
      %498 = vmatpush.msra.mxu0 %v350
      %499 = vmatmul.f32.gmra.mxu0 %v395
      %v500 = vpop.f32.mrf.mxu0
      %v501 = vadd.f32 %v481, %v500
      %502 = vdwg.mxu0
      %503 = vmatpush.msra.mxu0 %v381
      %504 = vmatpush.msra.mxu0 %v380
      %505 = vmatpush.msra.mxu0 %v379
      %506 = vmatpush.msra.mxu0 %v378
      %507 = vmatpush.msra.mxu0 %v377
      %508 = vmatpush.msra.mxu0 %v376
      %509 = vmatpush.msra.mxu0 %v375
      %510 = vmatpush.msra.mxu0 %v374
      %511 = vmatpush.msra.mxu0 %v373
      %512 = vmatpush.msra.mxu0 %v372
      %513 = vmatpush.msra.mxu0 %v371
      %514 = vmatpush.msra.mxu0 %v370
      %515 = vmatpush.msra.mxu0 %v369
      %516 = vmatpush.msra.mxu0 %v368
      %517 = vmatpush.msra.mxu0 %v367
      %518 = vmatpush.msra.mxu0 %v366
      %519 = vmatmul.f32.gmra.mxu0 %v396
      %v520 = vpop.f32.mrf.mxu0
      %v521 = vadd.f32 %v501, %v520
      %522 = vdwg.mxu0
      %523 = vst [vmem:[#allocation10] sm:$0x3] %v521
    $region37: #{tpu_custom_call.1} parent=1 // pred_fallthru
      _
    // Predicated region
    $region38: #{tpu_custom_call.1} parent=1 // pred_check
      _
    $region39: #{tpu_custom_call.1} parent=1 // pred_check_branch
      %525 = sbr.rel (0) target = $region41
    $region40: #{tpu_custom_call.1} parent=1 // pred_region
      %527 = vsyncadd [#allocation6], 0
      %s529 = sshll.u32 [#allocation10], 4
      %s530 = int_to_ptr.vmem [resolvable:$true] %s529
      %s531 = sshll.u32 %s4, 4
      %s532 = int_to_ptr.hbm [resolvable:$true] %s531
      %534 = dma.vmem_to_hbm [thread:$0]  %s530, 32, %s532, [#allocation6]
    $region41: #{tpu_custom_call.1} parent=1 // pred_fallthru
      _
    // Predicated region
    $region42: #{tpu_custom_call.1} parent=1 // pred_check
      _
    $region43: #{tpu_custom_call.1} parent=1 // pred_check_branch
      %536 = sbr.rel (0) target = $region45
    $region44: #{tpu_custom_call.1} parent=1 // pred_region
      %538 = dma.done [#allocation6], 32
    $region45: #{tpu_custom_call.1} parent=1 // pred_fallthru
      _
    %539 = vsyncpa [#allocation5], 1
    %540 = vsyncpa [#allocation8], 1
    %541 = vsyncpa [#allocation6], 1

</llo_original>
